<compile_context>
chip_gen: v5e
topology: v5e:2x2
jax: 0.10.0
libtpu: 0.0.40
codegen_flags: <defaults>
</compile_context>

<pallas_src>
import jax
import jax.numpy as jnp
from jax.experimental import pallas as pl
from jax.experimental.pallas import tpu as pltpu

# ---- static configuration (small, consistent with the module's forward) ----
BATCH = 2
SEQ_LEN = 8
FIX_LEN = 4
HIDDEN = 32          # self.bert.config.hidden_size
N_LAYERS = 4         # self.n_layers
N_OUT = 16           # n_out != hidden_size -> projection exists
VOCAB = 50
PAD_INDEX = 0        # config.pad_token_id

LANE = 128           # TPU lane width; output padded to a multiple of this
MAX_TOKEN_TILE = 512 # token tile at real sizes (sized so 2x-buffered bf16 layer tile fits VMEM)


def _round_up(x, m):
    return (x + m - 1) // m * m


def bert_embed_kernel(w_ref, hs_ref, mask_ref, proj_ref, out_ref, acc_ref):
    """Fused ScalarMix + masked subword pooling + projection.

    Grid = (token_tiles [parallel], n_layers [arbitrary reduction]).

    w_ref    : SMEM (L,)                  softmax(scalar_mix.weights) * gamma
    hs_ref   : VMEM (TN, F, H) bf16       hidden states of layer l for this token tile
    mask_ref : VMEM (TN, F)    f32        1.0 where subword != pad_index else 0.0
    proj_ref : VMEM (H, n_out_pad) bf16   projection weight (pre-transposed, lane-padded)
    out_ref  : VMEM (TN, n_out_pad) f32
    acc_ref  : VMEM scratch (TN, H) f32   running ScalarMix+pool accumulator
    """
    l = pl.program_id(1)

    @pl.when(l == 0)
    def _init():
        acc_ref[...] = jnp.zeros_like(acc_ref)

    # ---- per-layer masked pooling + ScalarMix accumulate (live state stays (TN, H)) ----
    # Fold the layer weight into the (TN, F) mask (cheaper than scaling the (TN, H) pooled
    # vector); reduce the subword (sublane) axis on the XLU; accumulate in f32.
    wm = mask_ref[...] * w_ref[l]                            # (TN, F)  f32
    h = hs_ref[...].astype(jnp.float32)                      # (TN, F, H)
    acc_ref[...] += jnp.sum(h * wm[:, :, None], axis=1)      # (TN, H)

    @pl.when(l == pl.num_programs(1) - 1)
    def _finalize():
        # bert_lens with masked_fill_(lens.eq(0), 1); divide folded into one (TN,1) reciprocal.
        lens = jnp.sum(mask_ref[...], axis=1, keepdims=True)           # (TN, 1)
        inv = pl.reciprocal(jnp.maximum(lens, 1.0), approx=False)      # exact: tolerance-safe
        embed = (acc_ref[...] * inv).astype(proj_ref.dtype)            # (TN, H) bf16
        # projection: nn.Linear(hidden, n_out, bias=False) on the MXU, f32 accumulation,
        # lane-dense (n_out padded to 128) unmasked output store.
        out_ref[...] = jnp.dot(
            embed, proj_ref[...], preferred_element_type=jnp.float32
        ).astype(out_ref.dtype)


def bert_embedding_forward(subwords, params):
    """Glue: synthetic hidden states + call the fused, tiled Pallas kernel."""
    B, S, F = subwords.shape
    mask = subwords != PAD_INDEX                              # (B, S, F) bool

    # --- synthetic "BERT" hidden states (plain-JAX glue, deterministic) ---
    tok = params["tok_emb"][subwords.reshape(B, S * F)]       # (B, S*F, H)
    h = tok
    hs_layers = []
    for l in range(N_LAYERS):
        h = jnp.tanh(h @ params["layer_w"][l])                # (B, S*F, H)
        hs_layers.append(h)
    hs = jnp.stack(hs_layers, axis=0)                         # (L, B, S*F, H)
    hs = hs.reshape(N_LAYERS, B * S, F, HIDDEN)               # (L, N, F, H)
    hs = hs.astype(jnp.bfloat16)                              # halve HBM read traffic

    # --- ScalarMix parameters (softmax weights folded with gamma) ---
    w_scaled = (jax.nn.softmax(params["mix_weights"]) * params["mix_gamma"]).astype(jnp.float32)

    mask_f = mask.reshape(B * S, F).astype(jnp.float32)       # (N, F)

    # --- projection weight: pre-transposed, bf16, lane-padded to a multiple of 128 ---
    proj_t = params["proj_w"].T.astype(jnp.bfloat16)          # (H, n_out)
    n_out = proj_t.shape[1]
    n_out_pad = max(LANE, _round_up(n_out, LANE))
    proj_pad = jnp.zeros((HIDDEN, n_out_pad), jnp.bfloat16).at[:, :n_out].set(proj_t)

    # --- token-axis tiling (pad ragged token counts with zero tokens; sliced off below) ---
    N = B * S
    TN = min(MAX_TOKEN_TILE, _round_up(N, 8))                 # token tile, multiple of 8
    N_pad = _round_up(N, TN)
    if N_pad != N:
        hs = jnp.pad(hs, ((0, 0), (0, N_pad - N), (0, 0), (0, 0)))
        mask_f = jnp.pad(mask_f, ((0, N_pad - N), (0, 0)))    # zero mask -> lens clamp -> 0 out
    grid = (N_pad // TN, N_LAYERS)                            # (parallel, arbitrary-reduction)

    out = pl.pallas_call(
        bert_embed_kernel,
        out_shape=jax.ShapeDtypeStruct((N_pad, n_out_pad), jnp.float32),
        grid_spec=pltpu.PrefetchScalarGridSpec(
            num_scalar_prefetch=0,
            grid=grid,
            in_specs=[
                # ScalarMix weights: small scalar table, whole array resident in SMEM
                pl.BlockSpec(memory_space=pltpu.MemorySpace.SMEM),
                # hidden states: one layer (squeezed), one token tile per grid step
                pl.BlockSpec((None, TN, F, HIDDEN), lambda i, l: (l, i, 0, 0)),
                # subword mask tile: index independent of l -> stays resident across layers
                pl.BlockSpec((TN, F), lambda i, l: (i, 0)),
                # projection weight: constant index_map -> loaded once, stays resident
                pl.BlockSpec((HIDDEN, n_out_pad), lambda i, l: (0, 0)),
            ],
            out_specs=pl.BlockSpec((TN, n_out_pad), lambda i, l: (i, 0)),
            scratch_shapes=[pltpu.VMEM((TN, HIDDEN), jnp.float32)],
        ),
        compiler_params=pltpu.CompilerParams(
            # token tiles shard across TensorCores; layer axis is the serial reduction
            dimension_semantics=("parallel", "arbitrary"),
            # NOTE: at real BERT sizes (H=768/1024, large fix_len) raise vmem_limit_bytes per
            # generation (e.g. ~96 MiB on v5e/v6e, <=48 MiB on v7x) once TN is 256-512.
        ),
    )(w_scaled, hs, mask_f, proj_pad)

    embed = out[:N, :n_out].reshape(B, S, n_out)
    seq_attn = None   # use_attentions=False (module default)
    return embed, seq_attn


def reference_forward(subwords, params):
    """Pure-JAX f32 reference of the module semantics, for validation."""
    B, S, F = subwords.shape
    mask = (subwords != PAD_INDEX).astype(jnp.float32)
    tok = params["tok_emb"][subwords.reshape(B, S * F)]
    h = tok
    hs_layers = []
    for l in range(N_LAYERS):
        h = jnp.tanh(h @ params["layer_w"][l])
        hs_layers.append(h)
    hs = jnp.stack(hs_layers, 0).reshape(N_LAYERS, B * S, F, HIDDEN)
    w = jax.nn.softmax(params["mix_weights"]) * params["mix_gamma"]
    mix = jnp.einsum("l,lnfh->nfh", w, hs)
    m = mask.reshape(B * S, F)
    pooled = jnp.sum(mix * m[:, :, None], axis=1)
    lens = jnp.maximum(jnp.sum(m, axis=1, keepdims=True), 1.0)
    embed = pooled / lens
    embed = embed @ params["proj_w"].T
    return embed.reshape(B, S, N_OUT)


def init_params(key):
    k1, k2, k3, k4 = jax.random.split(key, 4)
    params = {
        # synthetic stand-in for the pretrained transformer
        "tok_emb": jax.random.normal(k1, (VOCAB, HIDDEN), jnp.float32) * 0.1,
        "layer_w": jax.random.normal(k2, (N_LAYERS, HIDDEN, HIDDEN), jnp.float32) * 0.2,
        # ScalarMix(n_layers): weights (L,), gamma scalar
        "mix_weights": jax.random.normal(k3, (N_LAYERS,), jnp.float32) * 0.1,
        "mix_gamma": jnp.float32(1.0),
        # nn.Linear(hidden_size, n_out, bias=False): weight (n_out, hidden)
        "proj_w": jax.random.normal(k4, (N_OUT, HIDDEN), jnp.float32) * 0.1,
    }
    return params


if __name__ == "__main__":
    key = jax.random.PRNGKey(0)
    kp, ks, km = jax.random.split(key, 3)
    params = init_params(kp)

    # subwords: (batch, seq_len, fix_len) int32, pad_index = 0
    subwords = jax.random.randint(ks, (BATCH, SEQ_LEN, FIX_LEN), 1, VOCAB, jnp.int32)
    drop = jax.random.bernoulli(km, 0.3, (BATCH, SEQ_LEN, FIX_LEN))
    subwords = jnp.where(drop, 0, subwords)
    # make one token fully padded to exercise the bert_lens.eq(0) -> 1 path
    subwords = subwords.at[0, SEQ_LEN - 1, :].set(0)

    embed, seq_attn = bert_embedding_forward(subwords, params)
    embed = jax.block_until_ready(embed)

    ref = reference_forward(subwords, params)
    assert embed.shape == (BATCH, SEQ_LEN, N_OUT)
    assert seq_attn is None
    # bf16 hidden states / projection weight (f32 accumulation) -> tolerance relaxed vs f32 ref
    assert jnp.allclose(embed, ref, atol=1e-2, rtol=1e-2), "mismatch vs pure-JAX reference"

    print("KERNEL_OK")
</pallas_src>

<mosaic_0001>
module attributes {stable_mosaic.version = 11 : i64} {
  func.func @bert_embed_kernel(%arg0: i32, %arg1: i32, %arg2: memref<4xf32, #tpu.memory_space<smem>>, %arg3: memref<1x16x4x32xbf16, #tpu.memory_space<vmem>>, %arg4: memref<16x4xf32, #tpu.memory_space<vmem>>, %arg5: memref<32x128xbf16, #tpu.memory_space<vmem>>, %arg6: memref<16x128xf32, #tpu.memory_space<vmem>>, %arg7: memref<16x32xf32, #tpu.memory_space<vmem>>) attributes {dimension_semantics = [#tpu.dimension_semantics<parallel>, #tpu.dimension_semantics<arbitrary>], iteration_bounds = array<i64: 1, 4>, scalar_prefetch = 0 : i64, scratch_operands = 1 : i64, tpu.core_type = #tpu.core_type<tc>, window_params = [{transform_indices = @transform_0, window_bounds = array<i64: 4>}, {transform_indices = @transform_1, window_bounds = array<i64: 1, 16, 4, 32>}, {transform_indices = @transform_2, window_bounds = array<i64: 16, 4>}, {pipeline_mode = #tpu.pipeline_mode<synchronous>, transform_indices = @transform_3, window_bounds = array<i64: 32, 128>}, {transform_indices = @transform_4, window_bounds = array<i64: 16, 128>}]} {
    %c0_i32 = arith.constant 0 : i32
    %0 = arith.cmpi eq, %arg1, %c0_i32 : i32
    %1 = arith.extui %0 : i1 to i32
    %c0_i32_0 = arith.constant 0 : i32
    %2 = arith.cmpi ne, %1, %c0_i32_0 : i32
    scf.if %2 {
      %cst_11 = arith.constant 0.000000e+00 : f32
      %21 = vector.broadcast %cst_11 : f32 to vector<16x32xf32>
      %c0_12 = arith.constant 0 : index
      %c0_13 = arith.constant 0 : index
      %22 = vector.load %arg7[%c0_12, %c0_13] : memref<16x32xf32, #tpu.memory_space<vmem>>, vector<16x32xf32>
      tpu.vector_store %arg7[%c0_12, %c0_13], %21 {strides = array<i32>} : memref<16x32xf32, #tpu.memory_space<vmem>>, vector<16x32xf32>,
    } else {
    }
    %c0 = arith.constant 0 : index
    %c0_1 = arith.constant 0 : index
    %3 = vector.load %arg4[%c0, %c0_1] : memref<16x4xf32, #tpu.memory_space<vmem>>, vector<16x4xf32>
    %4 = arith.index_cast %arg1 : i32 to index
    %5 = memref.load %arg2[%4] : memref<4xf32, #tpu.memory_space<smem>>
    %6 = vector.broadcast %5 : f32 to vector<16x4xf32>
    %7 = arith.mulf %3, %6 : vector<16x4xf32>
    %c0_2 = arith.constant 0 : index
    %c0_3 = arith.constant 0 : index
    %c0_4 = arith.constant 0 : index
    %c0_5 = arith.constant 0 : index
    %8 = vector.load %arg3[%c0_2, %c0_3, %c0_4, %c0_5] : memref<1x16x4x32xbf16, #tpu.memory_space<vmem>>, vector<1x16x4x32xbf16>
    %9 = vector.shape_cast %8 : vector<1x16x4x32xbf16> to vector<16x4x32xbf16>
    %10 = arith.extf %9 : vector<16x4x32xbf16> to vector<16x4x32xf32>
    %c0_6 = arith.constant 0 : index
    %c0_7 = arith.constant 0 : index
    %11 = vector.load %arg7[%c0_6, %c0_7] : memref<16x32xf32, #tpu.memory_space<vmem>>, vector<16x32xf32>
    %12 = vector.shape_cast %7 : vector<16x4xf32> to vector<16x4x1xf32>
    %13 = vector.broadcast %12 : vector<16x4x1xf32> to vector<16x4x32xf32>
    %14 = arith.mulf %10, %13 : vector<16x4x32xf32>
    %cst = arith.constant dense<0.000000e+00> : vector<16x32xf32>
    %15 = vector.multi_reduction <add>, %14, %cst [1] : vector<16x4x32xf32> to vector<16x32xf32>
    %16 = arith.addf %11, %15 : vector<16x32xf32>
    %c0_8 = arith.constant 0 : index
    %c0_9 = arith.constant 0 : index
    %17 = vector.load %arg7[%c0_8, %c0_9] : memref<16x32xf32, #tpu.memory_space<vmem>>, vector<16x32xf32>
    tpu.vector_store %arg7[%c0_8, %c0_9], %16 {strides = array<i32>} : memref<16x32xf32, #tpu.memory_space<vmem>>, vector<16x32xf32>,
    %c3_i32 = arith.constant 3 : i32
    %18 = arith.cmpi eq, %arg1, %c3_i32 : i32
    %19 = arith.extui %18 : i1 to i32
    %c0_i32_10 = arith.constant 0 : i32
    %20 = arith.cmpi ne, %19, %c0_i32_10 : i32
    scf.if %20 {
      %c0_11 = arith.constant 0 : index
      %c0_12 = arith.constant 0 : index
      %21 = vector.load %arg4[%c0_11, %c0_12] : memref<16x4xf32, #tpu.memory_space<vmem>>, vector<16x4xf32>
      %cst_13 = arith.constant dense<0.000000e+00> : vector<16xf32>
      %22 = vector.multi_reduction <add>, %21, %cst_13 [1] : vector<16x4xf32> to vector<16xf32>
      %23 = vector.shape_cast %22 : vector<16xf32> to vector<16x1xf32>
      %cst_14 = arith.constant 1.000000e+00 : f32
      %24 = vector.broadcast %cst_14 : f32 to vector<16x1xf32>
      %25 = arith.maximumf %23, %24 : vector<16x1xf32>
      %26 = tpu.reciprocal %25 : vector<16x1xf32> -> vector<16x1xf32>
      %c0_15 = arith.constant 0 : index
      %c0_16 = arith.constant 0 : index
      %27 = vector.load %arg7[%c0_15, %c0_16] : memref<16x32xf32, #tpu.memory_space<vmem>>, vector<16x32xf32>
      %28 = vector.broadcast %26 : vector<16x1xf32> to vector<16x32xf32>
      %29 = arith.mulf %27, %28 : vector<16x32xf32>
      %30 = arith.truncf %29 : vector<16x32xf32> to vector<16x32xbf16>
      %c0_17 = arith.constant 0 : index
      %c0_18 = arith.constant 0 : index
      %31 = vector.load %arg5[%c0_17, %c0_18] : memref<32x128xbf16, #tpu.memory_space<vmem>>, vector<32x128xbf16>
      %cst_19 = arith.constant dense<0.000000e+00> : vector<16x128xf32>
      %32 = tpu.matmul %30, %31, %cst_19 {dimension_numbers = #tpu.dot_dimension_numbers<[1], [0], [0], [1], [0, 0, 1, 1], [], []>} : vector<16x32xbf16>, vector<32x128xbf16>, vector<16x128xf32> -> vector<16x128xf32>
      %c0_20 = arith.constant 0 : index
      %c0_21 = arith.constant 0 : index
      %33 = vector.load %arg6[%c0_20, %c0_21] : memref<16x128xf32, #tpu.memory_space<vmem>>, vector<16x128xf32>
      tpu.vector_store %arg6[%c0_20, %c0_21], %32 {strides = array<i32>} : memref<16x128xf32, #tpu.memory_space<vmem>>, vector<16x128xf32>,
    } else {
    }
    return
  }
  func.func @transform_0(%arg0: i32, %arg1: i32) -> i32 {
    %c0_i32 = arith.constant 0 : i32
    %c0_i32_0 = arith.constant 0 : i32
    return %c0_i32 : i32
  }
  func.func @transform_1(%arg0: i32, %arg1: i32) -> (i32, i32, i32, i32) {
    %c0_i32 = arith.constant 0 : i32
    %c0_i32_0 = arith.constant 0 : i32
    %c0_i32_1 = arith.constant 0 : i32
    return %arg1, %arg0, %c0_i32, %c0_i32_0 : i32, i32, i32, i32
  }
  func.func @transform_2(%arg0: i32, %arg1: i32) -> (i32, i32) {
    %c0_i32 = arith.constant 0 : i32
    %c0_i32_0 = arith.constant 0 : i32
    return %arg0, %c0_i32 : i32, i32
  }
  func.func @transform_3(%arg0: i32, %arg1: i32) -> (i32, i32) {
    %c0_i32 = arith.constant 0 : i32
    %c0_i32_0 = arith.constant 0 : i32
    %c0_i32_1 = arith.constant 0 : i32
    return %c0_i32, %c0_i32_0 : i32, i32
  }
  func.func @transform_4(%arg0: i32, %arg1: i32) -> (i32, i32) {
    %c0_i32 = arith.constant 0 : i32
    %c0_i32_0 = arith.constant 0 : i32
    return %arg0, %c0_i32 : i32, i32
  }
}

</mosaic_0001>

<llo_original>
// kernel: tpu_custom_call.1
$region0: #{tpu_custom_call.1}
  #allocation0 [shape = 'u32[]', space=smem, size = 0x4, offset = 0x4, fixed_abs, tag = 'smem constant byte address 0x4 - core index']
  #allocation1 [shape = 'u32[72,128]{1,0:T(1,128)}', space=vmem, size = 0x9000, scoped, tag = 'internal scratch']
  #allocation2 [shape = 'f32[16,32]{1,0:T(8,128)}', space=vmem, size = 0x2000, scoped, tag = 'scratch operand']
  %s0 = inlined_call_operand.vmem [shape: f32[4], index: 0, kind: input, shape index: {}]
  %s1 = inlined_call_operand.hbm [shape: bf16[4,16,4,32], index: 1, kind: input, shape index: {}]
  %s2 = inlined_call_operand.vmem [shape: f32[16,4], index: 2, kind: input, shape index: {}]
  %s3 = inlined_call_operand.vmem [shape: bf16[32,128], index: 3, kind: input, shape index: {}]
  %s4 = inlined_call_operand.hbm [shape: f32[16,128], index: 4, kind: output, shape index: {}]
  %s5 = sld [smem:[#allocation0]]
  $region65: #{tpu_custom_call.1} parent=0
    _
  %s7 = ssub.s32 1, %s5
  %s8 = scalar_select 0, %s7, %s5
  $region1: #{tpu_custom_call.1} parent=0
    #allocation3 [shape = 'u8[512]{0}', space=smem, size = 0x200, scoped, tag = 'input window, operand 0, single buffered']
    #allocation4 [shape = 's32[2]{0}', space=sflag, size = 0x8, scoped, tag = 'scoped memory for tpu_custom_call.1']
    #allocation5 [shape = 's32[2]{0}', space=sflag, size = 0x8, scoped, tag = 'scoped memory for tpu_custom_call.1']
    #allocation6 [shape = 's32[2]{0}', space=sflag, size = 0x8, scoped, tag = 'scoped memory for tpu_custom_call.1']
    #allocation7 [shape = 'u8[32768]{0}', space=vmem, size = 0x8000, scoped, tag = 'input window, operand 1']
    #allocation8 [shape = 'u8[8192]{0}', space=vmem, size = 0x2000, scoped, tag = 'output window, operand 0, single buffered']
    %9 = vsyncpa [#allocation6], 0
    %10 = vsyncpa [#allocation4], 0
    %s11 = scalar_lea.sflag [#allocation4], 1
    %12 = vsyncpa %s11, 0
    %13 = vsyncpa [#allocation5], 0
    loop: start=0, step=1, limit=6
    $region2: #{tpu_custom_call.1} parent=1 // loop_pre_header
      _
    $region3: #{tpu_custom_call.1} parent=1 // loop_header
      %s15 = sphi 0, %s19
      %p16 = scmp.ge.s32.totalorder %s15, 6
      %s22 = sphi 0, %s34
      %s23 = sphi 0, %s30
      %s24 = sphi 0, %s22
      %s25 = sphi 0, %s23
      %s26 = sphi 0, %s24
      %s27 = sphi 0, %s25
      %s35 = sphi 0, %s35
      %s37 = sphi 0, %s35
      %s38 = sphi 0, %s37
      %s52 = sphi 0, %s38
      %s60 = sphi 0, %s62
      %s63 = sphi 0, %s60
      %s64 = sphi 0, %s63
      %s80 = sphi 0, %s64
      %s86 = sphi 0, %s88
      %s89 = sphi 0, %s86
      %s90 = sphi 0, %s89
      %s106 = sphi 0, %s90
      %s110 = sphi 0, %s110
      %s112 = sphi 0, %s110
      %s113 = sphi 0, %s112
      %s127 = sphi 0, %s113
      %s133 = sphi 0, %s135
      %s136 = sphi 0, %s133
      %s137 = sphi 0, %s136
      %s153 = sphi 0, %s137
    $region4: #{tpu_custom_call.1} parent=1 // loop_header_branch
      %18 = sbr.rel (%p16) target = $region8
    $region5: #{tpu_custom_call.1} parent=1 // loop_body
      %s20 = ssub.s32 %s15, 1
      %s21 = ssub.s32 %s15, 2
      %s28 = sadd.s32 1, %s23
      %p29 = scmp.ge.s32.totalorder %s28, 4
      %s30 = scalar_select %p29, 0, %s28
      %s31 = sadd.s32 1, %s22
      %s32 = scalar_select %p29, %s31, %s22
      %p33 = scmp.ge.s32.totalorder %s32, 1
      %s34 = scalar_select %p33, 0, %s32
      %s36 = sadd.s32 %s35, 1
      %p39 = scmp.eq.s32.totalorder %s15, 3
      %p40 = scmp.ne.s32.totalorder %s35, %s37
      %p41 = scmp.eq.s32.totalorder %s15, 0
      %p42 = por %p40, %p41
      %p43 = scmp.ne.s32.totalorder %s35, %s37
      %p44 = scmp.eq.s32.totalorder %s20, 3
      %p45 = por %p43, %p44
      %p46 = scmp.ne.s32.totalorder %s37, %s38
      %p47 = scmp.eq.s32.totalorder %s20, 0
      %p48 = por %p46, %p47
      %p49 = scmp.ne.s32.totalorder %s37, %s38
      %p50 = scmp.eq.s32.totalorder %s21, 3
      %p51 = por %p49, %p50
      %p53 = scmp.ne.s32.totalorder %s38, %s52
      %p54 = scmp.eq.s32.totalorder %s21, 0
      %p55 = por %p53, %p54
      %s56 = ssub.s32 %s23, %s30
      %s57 = ssub.s32 %s22, %s34
      %s58 = sor.u32 %s56, %s57
      %p59 = scmp.eq.s32.totalorder %s58, 0
      %s61 = sadd.s32 %s60, 1
      %s62 = scalar_select %p59, %s60, %s61
      %p65 = pneg %p59
      %p66 = scmp.eq.s32.totalorder %s15, 3
      %p67 = por %p65, %p66
      %p68 = scmp.ne.s32.totalorder %s60, %s63
      %p69 = scmp.eq.s32.totalorder %s15, 0
      %p70 = por %p68, %p69
      %p71 = scmp.ne.s32.totalorder %s60, %s63
      %p72 = scmp.eq.s32.totalorder %s20, 3
      %p73 = por %p71, %p72
      %p74 = scmp.ne.s32.totalorder %s63, %s64
      %p75 = scmp.eq.s32.totalorder %s20, 0
      %p76 = por %p74, %p75
      %p77 = scmp.ne.s32.totalorder %s63, %s64
      %p78 = scmp.eq.s32.totalorder %s21, 3
      %p79 = por %p77, %p78
      %p81 = scmp.ne.s32.totalorder %s64, %s80
      %p82 = scmp.eq.s32.totalorder %s21, 0
      %p83 = por %p81, %p82
      %s84 = ssub.s32 %s22, %s34
      %p85 = scmp.eq.s32.totalorder %s84, 0
      %s87 = sadd.s32 %s86, 1
      %s88 = scalar_select %p85, %s86, %s87
      %p91 = pneg %p85
      %p92 = scmp.eq.s32.totalorder %s15, 3
      %p93 = por %p91, %p92
      %p94 = scmp.ne.s32.totalorder %s86, %s89
      %p95 = scmp.eq.s32.totalorder %s15, 0
      %p96 = por %p94, %p95
      %p97 = scmp.ne.s32.totalorder %s86, %s89
      %p98 = scmp.eq.s32.totalorder %s20, 3
      %p99 = por %p97, %p98
      %p100 = scmp.ne.s32.totalorder %s89, %s90
      %p101 = scmp.eq.s32.totalorder %s20, 0
      %p102 = por %p100, %p101
      %p103 = scmp.ne.s32.totalorder %s89, %s90
      %p104 = scmp.eq.s32.totalorder %s21, 3
      %p105 = por %p103, %p104
      %p107 = scmp.ne.s32.totalorder %s90, %s106
      %p108 = scmp.eq.s32.totalorder %s21, 0
      %p109 = por %p107, %p108
      %s111 = sadd.s32 %s110, 1
      %p114 = scmp.eq.s32.totalorder %s15, 3
      %p115 = scmp.ne.s32.totalorder %s110, %s112
      %p116 = scmp.eq.s32.totalorder %s15, 0
      %p117 = por %p115, %p116
      %p118 = scmp.ne.s32.totalorder %s110, %s112
      %p119 = scmp.eq.s32.totalorder %s20, 3
      %p120 = por %p118, %p119
      %p121 = scmp.ne.s32.totalorder %s112, %s113
      %p122 = scmp.eq.s32.totalorder %s20, 0
      %p123 = por %p121, %p122
      %p124 = scmp.ne.s32.totalorder %s112, %s113
      %p125 = scmp.eq.s32.totalorder %s21, 3
      %p126 = por %p124, %p125
      %p128 = scmp.ne.s32.totalorder %s113, %s127
      %p129 = scmp.eq.s32.totalorder %s21, 0
      %p130 = por %p128, %p129
      %s131 = ssub.s32 %s22, %s34
      %p132 = scmp.eq.s32.totalorder %s131, 0
      %s134 = sadd.s32 %s133, 1
      %s135 = scalar_select %p132, %s133, %s134
      %p138 = pneg %p132
      %p139 = scmp.eq.s32.totalorder %s15, 3
      %p140 = por %p138, %p139
      %p141 = scmp.ne.s32.totalorder %s133, %s136
      %p142 = scmp.eq.s32.totalorder %s15, 0
      %p143 = por %p141, %p142
      %p144 = scmp.ne.s32.totalorder %s133, %s136
      %p145 = scmp.eq.s32.totalorder %s20, 3
      %p146 = por %p144, %p145
      %p147 = scmp.ne.s32.totalorder %s136, %s137
      %p148 = scmp.eq.s32.totalorder %s20, 0
      %p149 = por %p147, %p148
      %p150 = scmp.ne.s32.totalorder %s136, %s137
      %p151 = scmp.eq.s32.totalorder %s21, 3
      %p152 = por %p150, %p151
      %p154 = scmp.ne.s32.totalorder %s137, %s153
      %p155 = scmp.eq.s32.totalorder %s21, 0
      %p156 = por %p154, %p155
      %p157 = scmp.le.s32.totalorder 1, %s15
      %p158 = scmp.lt.s32.totalorder %s15, 5
      %p159 = pnand %p157, %p158
      %p160 = pneg %p159
      // Predicated region
      $region9: #{tpu_custom_call.1} parent=5 // pred_check
        _
      $region10: #{tpu_custom_call.1} parent=5 // pred_check_branch
        %162 = sbr.rel (%p159) target = $region12
      $region11: #{tpu_custom_call.1} parent=5 // pred_region
        %s163 = ssub.s32 %s15, 1
        // Predicated region
        $region13: #{tpu_custom_call.1} parent=11 // pred_check
          %p164 = pneg %p48
        $region14: #{tpu_custom_call.1} parent=11 // pred_check_branch
          %166 = sbr.rel (%p164) target = $region16
        $region15: #{tpu_custom_call.1} parent=11 // pred_region
          %168 = vsyncadd [#allocation6], 0
          %s170 = sshll.u32 %s0, 4
          %s171 = int_to_ptr.vmem [resolvable:$true] %s170
          %173 = dma.vmem_to_smem %s171, 16, [#allocation3], [#allocation6]
        $region16: #{tpu_custom_call.1} parent=11 // pred_fallthru
          _
        // Predicated region
        $region17: #{tpu_custom_call.1} parent=11 // pred_check
          %p174 = pneg %p102
        $region18: #{tpu_custom_call.1} parent=11 // pred_check_branch
          %176 = sbr.rel (%p174) target = $region20
        $region19: #{tpu_custom_call.1} parent=11 // pred_region
          %s177 = smul.u32 2, %s24
          %p178 = scmp.lt.s32.totalorder %s177, 1
          %s179 = scalar_select %p178, %s177, 1
          %s180 = smul.addr %s179, 8
          %s181 = scalar_lea.vmem %s2, %s180
          %s182 = smul.u32 2, %s24
        $region20: #{tpu_custom_call.1} parent=11 // pred_fallthru
          _
        // Predicated region
        $region21: #{tpu_custom_call.1} parent=11 // pred_check
          %p183 = pneg %p123
        $region22: #{tpu_custom_call.1} parent=11 // pred_check_branch
          %185 = sbr.rel (%p183) target = $region24
        $region23: #{tpu_custom_call.1} parent=11 // pred_region
          _
        $region24: #{tpu_custom_call.1} parent=11 // pred_fallthru
          _
      $region12: #{tpu_custom_call.1} parent=5 // pred_fallthru
        _
      %p186 = scmp.lt.s32.totalorder %s15, 4
      // Predicated region
      $region25: #{tpu_custom_call.1} parent=5 // pred_check
        %p187 = pneg %p186
      $region26: #{tpu_custom_call.1} parent=5 // pred_check_branch
        %189 = sbr.rel (%p187) target = $region28
      $region27: #{tpu_custom_call.1} parent=5 // pred_region
        // Predicated region
        $region29: #{tpu_custom_call.1} parent=27 // pred_check
          %p190 = pneg %p70
        $region30: #{tpu_custom_call.1} parent=27 // pred_check_branch
          %192 = sbr.rel (%p190) target = $region32
        $region31: #{tpu_custom_call.1} parent=27 // pred_region
          %s193 = sand.u32 %s60, 1
          %s194 = scalar_lea.sflag [#allocation4], %s193
          %s195 = sand.u32 %s60, 1
          %s196 = smul.addr %s195, 32
          %s197 = scalar_lea.vmem [#allocation7], %s196
          %s198 = smul.u32 16, %s22
          %200 = vsyncadd %s194, 0
          %s201 = smul.addr %s23, 16
          %s202 = sadd.s32 %s198, %s201
          %s203 = smul.addr %s202, 2
          %s204 = scalar_lea.hbm %s1, %s203
          %s205 = sshll.u32 %s204, 4
          %s206 = int_to_ptr.hbm [resolvable:$true] %s205
          %s207 = sshll.u32 %s197, 4
          %s208 = int_to_ptr.vmem [resolvable:$true] %s207
          %213 = dma.hbm_to_vmem [thread:$0]  %s206, 512, %s208, %s194, 32, 32, 2
        $region32: #{tpu_custom_call.1} parent=27 // pred_fallthru
          _
      $region28: #{tpu_custom_call.1} parent=5 // pred_fallthru
        _
      %p214 = scmp.le.s32.totalorder 1, %s15
      %p215 = scmp.lt.s32.totalorder %s15, 5
      %p216 = pnand %p214, %p215
      %p217 = pneg %p216
      // Predicated region
      $region33: #{tpu_custom_call.1} parent=5 // pred_check
        _
      $region34: #{tpu_custom_call.1} parent=5 // pred_check_branch
        %219 = sbr.rel (%p216) target = $region36
      $region35: #{tpu_custom_call.1} parent=5 // pred_region
        %s220 = ssub.s32 %s15, 1
        // Predicated region
        $region37: #{tpu_custom_call.1} parent=35 // pred_check
          %p221 = pneg %p48
        $region38: #{tpu_custom_call.1} parent=35 // pred_check_branch
          %223 = sbr.rel (%p221) target = $region40
        $region39: #{tpu_custom_call.1} parent=35 // pred_region
          %225 = dma.done [#allocation6], 16
        $region40: #{tpu_custom_call.1} parent=35 // pred_fallthru
          _
        %s226 = sand.u32 %s63, 1
        %s227 = scalar_lea.sflag [#allocation4], %s226
        %s228 = sand.u32 %s63, 1
        %s229 = smul.addr %s228, 32
        %s230 = scalar_lea.vmem [#allocation7], %s229
        // Predicated region
        $region41: #{tpu_custom_call.1} parent=35 // pred_check
          %p231 = pneg %p76
        $region42: #{tpu_custom_call.1} parent=35 // pred_check_branch
          %233 = sbr.rel (%p231) target = $region44
        $region43: #{tpu_custom_call.1} parent=35 // pred_region
          %235 = dma.done %s227, 512
        $region44: #{tpu_custom_call.1} parent=35 // pred_fallthru
          _
        %236 = sfence
        %p237 = pneg %p48
        %p238 = pneg %p45
        %s239 = sand.u32 %s63, 1
        %s240 = scalar_lea.sflag [#allocation4], %s239
        %s241 = sand.u32 %s63, 1
        %s242 = smul.addr %s241, 32
        %s243 = scalar_lea.vmem [#allocation7], %s242
        %p244 = pneg %p76
        %p245 = pneg %p73
        %s246 = smul.u32 2, %s24
        %p247 = scmp.lt.s32.totalorder %s246, 1
        %s248 = scalar_select %p247, %s246, 1
        %s249 = smul.addr %s248, 8
        %s250 = scalar_lea.vmem %s2, %s249
        %p251 = pneg %p102
        %p252 = pneg %p99
        %p253 = pneg %p123
        %p254 = pneg %p120
        %p255 = pneg %p149
        %p256 = pneg %p146
        %s257 = smul.u32 16, %s24
        %s258 = smul.u32 2, %s24
        %p259 = scmp.lt.s32.totalorder %s258, 1
        %s260 = scalar_select %p259, %s258, 1
        %s261 = smul.addr %s260, 8
        %s262 = scalar_lea.vmem %s2, %s261
        %s263 = smul.u32 2, %s24
        %s264 = smul.u32 2, %s24
        %p266 = scmp.eq.s32.totalorder %s25, 0
        // Predicated region
        $region45: #{tpu_custom_call.1} parent=35 // pred_check
          %p267 = pneg %p266
        $region46: #{tpu_custom_call.1} parent=35 // pred_check_branch
          %269 = sbr.rel (%p267) target = $region48
        $region47: #{tpu_custom_call.1} parent=35 // pred_region
          %vm270 = vcmask 261120
          %271 = vst.msk [vmem:[#allocation2] sm:$0xff] %vm270, 0.0
          %272 = vst.msk [vmem:[#allocation2 + $0x8] sm:$0xff] %vm270, 0.0
        $region48: #{tpu_custom_call.1} parent=35 // pred_fallthru
          _
        %v273 = vld [vmem:[%s262] sm:$0xff]
        %v274 = vld [vmem:[%s262 + $0x8] sm:$0xff]
        %s275 = sld [smem:[#allocation3 + %s25]]
        %v276 = vstv %s275
        %v277 = vmul.f32 %v273, %v276
        %v278 = vmul.f32 %v274, %v276
        %v279 = vld [vmem:[%s230] sm:$0x3]
        %v280 = vld [vmem:[%s230 + $0x2] sm:$0x3]
        %v281 = vld [vmem:[%s230 + $0x4] sm:$0x3]
        %v282 = vld [vmem:[%s230 + $0x6] sm:$0x3]
        %v283 = vld [vmem:[%s230 + $0x8] sm:$0x3]
        %v284 = vld [vmem:[%s230 + $0xa] sm:$0x3]
        %v285 = vld [vmem:[%s230 + $0xc] sm:$0x3]
        %v286 = vld [vmem:[%s230 + $0xe] sm:$0x3]
        %v287 = vld [vmem:[%s230 + $0x10] sm:$0x3]
        %v288 = vld [vmem:[%s230 + $0x12] sm:$0x3]
        %v289 = vld [vmem:[%s230 + $0x14] sm:$0x3]
        %v290 = vld [vmem:[%s230 + $0x16] sm:$0x3]
        %v291 = vld [vmem:[%s230 + $0x18] sm:$0x3]
        %v292 = vld [vmem:[%s230 + $0x1a] sm:$0x3]
        %v293 = vld [vmem:[%s230 + $0x1c] sm:$0x3]
        %v294 = vld [vmem:[%s230 + $0x1e] sm:$0x3]
        %v295 = vunpack.c.l.bf16 %v279
        %v296 = vunpack.c.l.bf16 %v280
        %v297 = vunpack.c.l.bf16 %v281
        %v298 = vunpack.c.l.bf16 %v282
        %v299 = vunpack.c.l.bf16 %v283
        %v300 = vunpack.c.l.bf16 %v284
        %v301 = vunpack.c.l.bf16 %v285
        %v302 = vunpack.c.l.bf16 %v286
        %v303 = vunpack.c.l.bf16 %v287
        %v304 = vunpack.c.l.bf16 %v288
        %v305 = vunpack.c.l.bf16 %v289
        %v306 = vunpack.c.l.bf16 %v290
        %v307 = vunpack.c.l.bf16 %v291
        %v308 = vunpack.c.l.bf16 %v292
        %v309 = vunpack.c.l.bf16 %v293
        %v310 = vunpack.c.l.bf16 %v294
        %v311 = vld [vmem:[#allocation2] sm:$0xff]
        %v312 = vld [vmem:[#allocation2 + $0x8] sm:$0xff]
        %v313 = vperm.slane %v277, 0
        %v314 = vlaneseq
        %v315 = vshrl.u32 %v314, 7
        %317 = vset.pattern.permute.xlu0 %v315
        %318 = vperm.xlu0 %317, %v313
        %v319 = vpop.permute.xlu0 %318
        %v320 = vperm.slane %v277, 1
        %v321 = vlaneseq
        %v322 = vshrl.u32 %v321, 7
        %324 = vset.pattern.permute.xlu0 %v322
        %325 = vperm.xlu0 %324, %v320
        %v326 = vpop.permute.xlu0 %325
        %v327 = vperm.slane %v277, 2
        %v328 = vlaneseq
        %v329 = vshrl.u32 %v328, 7
        %331 = vset.pattern.permute.xlu0 %v329
        %332 = vperm.xlu0 %331, %v327
        %v333 = vpop.permute.xlu0 %332
        %v334 = vperm.slane %v277, 3
        %v335 = vlaneseq
        %v336 = vshrl.u32 %v335, 7
        %338 = vset.pattern.permute.xlu0 %v336
        %339 = vperm.xlu0 %338, %v334
        %v340 = vpop.permute.xlu0 %339
        %v341 = vperm.slane %v277, 4
        %v342 = vlaneseq
        %v343 = vshrl.u32 %v342, 7
        %345 = vset.pattern.permute.xlu0 %v343
        %346 = vperm.xlu0 %345, %v341
        %v347 = vpop.permute.xlu0 %346
        %v348 = vperm.slane %v277, 5
        %v349 = vlaneseq
        %v350 = vshrl.u32 %v349, 7
        %352 = vset.pattern.permute.xlu0 %v350
        %353 = vperm.xlu0 %352, %v348
        %v354 = vpop.permute.xlu0 %353
        %v355 = vperm.slane %v277, 6
        %v356 = vlaneseq
        %v357 = vshrl.u32 %v356, 7
        %359 = vset.pattern.permute.xlu0 %v357
        %360 = vperm.xlu0 %359, %v355
        %v361 = vpop.permute.xlu0 %360
        %v362 = vperm.slane %v277, 7
        %v363 = vlaneseq
        %v364 = vshrl.u32 %v363, 7
        %366 = vset.pattern.permute.xlu0 %v364
        %367 = vperm.xlu0 %366, %v362
        %v368 = vpop.permute.xlu0 %367
        %v369 = vperm.slane %v278, 0
        %v370 = vlaneseq
        %v371 = vshrl.u32 %v370, 7
        %373 = vset.pattern.permute.xlu0 %v371
        %374 = vperm.xlu0 %373, %v369
        %v375 = vpop.permute.xlu0 %374
        %v376 = vperm.slane %v278, 1
        %v377 = vlaneseq
        %v378 = vshrl.u32 %v377, 7
        %380 = vset.pattern.permute.xlu0 %v378
        %381 = vperm.xlu0 %380, %v376
        %v382 = vpop.permute.xlu0 %381
        %v383 = vperm.slane %v278, 2
        %v384 = vlaneseq
        %v385 = vshrl.u32 %v384, 7
        %387 = vset.pattern.permute.xlu0 %v385
        %388 = vperm.xlu0 %387, %v383
        %v389 = vpop.permute.xlu0 %388
        %v390 = vperm.slane %v278, 3
        %v391 = vlaneseq
        %v392 = vshrl.u32 %v391, 7
        %394 = vset.pattern.permute.xlu0 %v392
        %395 = vperm.xlu0 %394, %v390
        %v396 = vpop.permute.xlu0 %395
        %v397 = vperm.slane %v278, 4
        %v398 = vlaneseq
        %v399 = vshrl.u32 %v398, 7
        %401 = vset.pattern.permute.xlu0 %v399
        %402 = vperm.xlu0 %401, %v397
        %v403 = vpop.permute.xlu0 %402
        %v404 = vperm.slane %v278, 5
        %v405 = vlaneseq
        %v406 = vshrl.u32 %v405, 7
        %408 = vset.pattern.permute.xlu0 %v406
        %409 = vperm.xlu0 %408, %v404
        %v410 = vpop.permute.xlu0 %409
        %v411 = vperm.slane %v278, 6
        %v412 = vlaneseq
        %v413 = vshrl.u32 %v412, 7
        %415 = vset.pattern.permute.xlu0 %v413
        %416 = vperm.xlu0 %415, %v411
        %v417 = vpop.permute.xlu0 %416
        %v418 = vperm.slane %v278, 7
        %v419 = vlaneseq
        %v420 = vshrl.u32 %v419, 7
        %422 = vset.pattern.permute.xlu0 %v420
        %423 = vperm.xlu0 %422, %v418
        %v424 = vpop.permute.xlu0 %423
        %v425 = vmul.f32 %v295, %v319
        %v426 = vmul.f32 %v296, %v326
        %v427 = vmul.f32 %v297, %v333
        %v428 = vmul.f32 %v298, %v340
        %v429 = vmul.f32 %v299, %v347
        %v430 = vmul.f32 %v300, %v354
        %v431 = vmul.f32 %v301, %v361
        %v432 = vmul.f32 %v302, %v368
        %v433 = vmul.f32 %v303, %v375
        %v434 = vmul.f32 %v304, %v382
        %v435 = vmul.f32 %v305, %v389
        %v436 = vmul.f32 %v306, %v396
        %v437 = vmul.f32 %v307, %v403
        %v438 = vmul.f32 %v308, %v410
        %v439 = vmul.f32 %v309, %v417
        %v440 = vmul.f32 %v310, %v424
        %vm441 = vcmask 257024
        %v442 = vsel %vm441, %v425, 0.0
        %v443 = vrot.slane %v442, 4
        %v444 = vadd.f32 %v442, %v443
        %v445 = vrot.slane %v444, 2
        %v446 = vadd.f32 %v444, %v445
        %v447 = vrot.slane %v446, 1
        %v448 = vadd.f32 %v446, %v447
        %v449 = vsel %vm441, %v426, 0.0
        %v450 = vrot.slane %v449, 4
        %v451 = vadd.f32 %v449, %v450
        %v452 = vrot.slane %v451, 2
        %v453 = vadd.f32 %v451, %v452
        %v454 = vrot.slane %v453, 1
        %v455 = vadd.f32 %v453, %v454
        %v456 = vsel %vm441, %v427, 0.0
        %v457 = vrot.slane %v456, 4
        %v458 = vadd.f32 %v456, %v457
        %v459 = vrot.slane %v458, 2
        %v460 = vadd.f32 %v458, %v459
        %v461 = vrot.slane %v460, 1
        %v462 = vadd.f32 %v460, %v461
        %v463 = vsel %vm441, %v428, 0.0
        %v464 = vrot.slane %v463, 4
        %v465 = vadd.f32 %v463, %v464
        %v466 = vrot.slane %v465, 2
        %v467 = vadd.f32 %v465, %v466
        %v468 = vrot.slane %v467, 1
        %v469 = vadd.f32 %v467, %v468
        %v470 = vsel %vm441, %v429, 0.0
        %v471 = vrot.slane %v470, 4
        %v472 = vadd.f32 %v470, %v471
        %v473 = vrot.slane %v472, 2
        %v474 = vadd.f32 %v472, %v473
        %v475 = vrot.slane %v474, 1
        %v476 = vadd.f32 %v474, %v475
        %v477 = vsel %vm441, %v430, 0.0
        %v478 = vrot.slane %v477, 4
        %v479 = vadd.f32 %v477, %v478
        %v480 = vrot.slane %v479, 2
        %v481 = vadd.f32 %v479, %v480
        %v482 = vrot.slane %v481, 1
        %v483 = vadd.f32 %v481, %v482
        %v484 = vsel %vm441, %v431, 0.0
        %v485 = vrot.slane %v484, 4
        %v486 = vadd.f32 %v484, %v485
        %v487 = vrot.slane %v486, 2
        %v488 = vadd.f32 %v486, %v487
        %v489 = vrot.slane %v488, 1
        %v490 = vadd.f32 %v488, %v489
        %v491 = vsel %vm441, %v432, 0.0
        %v492 = vrot.slane %v491, 4
        %v493 = vadd.f32 %v491, %v492
        %v494 = vrot.slane %v493, 2
        %v495 = vadd.f32 %v493, %v494
        %v496 = vrot.slane %v495, 1
        %v497 = vadd.f32 %v495, %v496
        %v498 = vsel %vm441, %v433, 0.0
        %v499 = vrot.slane %v498, 4
        %v500 = vadd.f32 %v498, %v499
        %v501 = vrot.slane %v500, 2
        %v502 = vadd.f32 %v500, %v501
        %v503 = vrot.slane %v502, 1
        %v504 = vadd.f32 %v502, %v503
        %v505 = vsel %vm441, %v434, 0.0
        %v506 = vrot.slane %v505, 4
        %v507 = vadd.f32 %v505, %v506
        %v508 = vrot.slane %v507, 2
        %v509 = vadd.f32 %v507, %v508
        %v510 = vrot.slane %v509, 1
        %v511 = vadd.f32 %v509, %v510
        %v512 = vsel %vm441, %v435, 0.0
        %v513 = vrot.slane %v512, 4
        %v514 = vadd.f32 %v512, %v513
        %v515 = vrot.slane %v514, 2
        %v516 = vadd.f32 %v514, %v515
        %v517 = vrot.slane %v516, 1
        %v518 = vadd.f32 %v516, %v517
        %v519 = vsel %vm441, %v436, 0.0
        %v520 = vrot.slane %v519, 4
        %v521 = vadd.f32 %v519, %v520
        %v522 = vrot.slane %v521, 2
        %v523 = vadd.f32 %v521, %v522
        %v524 = vrot.slane %v523, 1
        %v525 = vadd.f32 %v523, %v524
        %v526 = vsel %vm441, %v437, 0.0
        %v527 = vrot.slane %v526, 4
        %v528 = vadd.f32 %v526, %v527
        %v529 = vrot.slane %v528, 2
        %v530 = vadd.f32 %v528, %v529
        %v531 = vrot.slane %v530, 1
        %v532 = vadd.f32 %v530, %v531
        %v533 = vsel %vm441, %v438, 0.0
        %v534 = vrot.slane %v533, 4
        %v535 = vadd.f32 %v533, %v534
        %v536 = vrot.slane %v535, 2
        %v537 = vadd.f32 %v535, %v536
        %v538 = vrot.slane %v537, 1
        %v539 = vadd.f32 %v537, %v538
        %v540 = vsel %vm441, %v439, 0.0
        %v541 = vrot.slane %v540, 4
        %v542 = vadd.f32 %v540, %v541
        %v543 = vrot.slane %v542, 2
        %v544 = vadd.f32 %v542, %v543
        %v545 = vrot.slane %v544, 1
        %v546 = vadd.f32 %v544, %v545
        %v547 = vsel %vm441, %v440, 0.0
        %v548 = vrot.slane %v547, 4
        %v549 = vadd.f32 %v547, %v548
        %v550 = vrot.slane %v549, 2
        %v551 = vadd.f32 %v549, %v550
        %v552 = vrot.slane %v551, 1
        %v553 = vadd.f32 %v551, %v552
        %vm570 = vcmask 1041409
        %v571 = vsel %vm570, %v455, %v448
        %vm572 = vcmask 1042434
        %v573 = vsel %vm572, %v462, %v571
        %vm574 = vcmask 1043459
        %v575 = vsel %vm574, %v469, %v573
        %vm576 = vcmask 1044484
        %v577 = vsel %vm576, %v476, %v575
        %vm578 = vcmask 1045509
        %v579 = vsel %vm578, %v483, %v577
        %vm580 = vcmask 1046534
        %v581 = vsel %vm580, %v490, %v579
        %vm582 = vcmask 1047559
        %v583 = vsel %vm582, %v497, %v581
        %v584 = vsel %vm570, %v511, %v504
        %v585 = vsel %vm572, %v518, %v584
        %v586 = vsel %vm574, %v525, %v585
        %v587 = vsel %vm576, %v532, %v586
        %v588 = vsel %vm578, %v539, %v587
        %v589 = vsel %vm580, %v546, %v588
        %v590 = vsel %vm582, %v553, %v589
        %v593 = vadd.f32 %v311, %v583
        %v594 = vadd.f32 %v312, %v590
        %vm595 = vcmask 261120
        %596 = vst.msk [vmem:[#allocation2] sm:$0xff] %vm595, %v593
        %597 = vst.msk [vmem:[#allocation2 + $0x8] sm:$0xff] %vm595, %v594
        %p598 = scmp.eq.s32.totalorder %s25, 3
        // Predicated region
        $region49: #{tpu_custom_call.1} parent=35 // pred_check
          %p599 = pneg %p598
        $region50: #{tpu_custom_call.1} parent=35 // pred_check_branch
          %601 = sbr.rel (%p599) target = $region52
        $region51: #{tpu_custom_call.1} parent=35 // pred_region
          %v602 = vld [vmem:[%s262] sm:$0xff]
          %v603 = vld [vmem:[%s262 + $0x8] sm:$0xff]
          %vm604 = vcmask 31744
          %v605 = vsel %vm604, %v602, 0.0
          %606 = vadd.xlane.f32.xlu0 %v605
          %v607 = vpop.xlane.xlu0 %606
          %v608 = vsel %vm604, %v603, 0.0
          %609 = vadd.xlane.f32.xlu0 %v608
          %v610 = vpop.xlane.xlu0 %609
          %v611 = vmax.f32 %v607, 1.0
          %v612 = vmax.f32 %v610, 1.0
          %v613 = vrcp.pop %v611
          %v614 = vmul.f32 %v611, %v613
          %v615 = vsub.f32 1.0, %v614
          %v616 = vmul.f32 %v613, %v615
          %v617 = vadd.f32 %v613, %v616
          %vm618 = vweird.f32 %v611
          %vm619 = vweird.f32 %v613
          %vm620 = vmor %vm618, %vm619
          %v621 = vsel %vm620, %v613, %v617
          %v622 = vand.u32 2147483647, %v611
          %vm623 = vcmp.eq.f32.partialorder %v622, 8.507059e+37
          %v624 = vand.u32 %v611, 2147483648
          %v625 = vor.u32 1.1754944e-38, %v624
          %v626 = vsel %vm623, %v625, %v621
          %v627 = vrcp.pop %v612
          %v628 = vmul.f32 %v612, %v627
          %v629 = vsub.f32 1.0, %v628
          %v630 = vmul.f32 %v627, %v629
          %v631 = vadd.f32 %v627, %v630
          %vm632 = vweird.f32 %v612
          %vm633 = vweird.f32 %v627
          %vm634 = vmor %vm632, %vm633
          %v635 = vsel %vm634, %v627, %v631
          %v636 = vand.u32 2147483647, %v612
          %vm637 = vcmp.eq.f32.partialorder %v636, 8.507059e+37
          %v638 = vand.u32 %v612, 2147483648
          %v639 = vor.u32 1.1754944e-38, %v638
          %v640 = vsel %vm637, %v639, %v635
          %v641 = vld [vmem:[#allocation2] sm:$0xff]
          %v642 = vld [vmem:[#allocation2 + $0x8] sm:$0xff]
          %v643 = vmul.f32 %v641, %v626
          %v644 = vmul.f32 %v642, %v640
          %v645 = vpack.c.bf16 %v644, %v643
          %v646 = vld [vmem:[%s3] sm:$0xf]
          %v647 = vld [vmem:[%s3 + $0x4] sm:$0xf]
          %v648 = vld [vmem:[%s3 + $0x8] sm:$0xf]
          %v649 = vld [vmem:[%s3 + $0xc] sm:$0xf]
          %v654 = vunpack.c.l.b16 %v646
          %v655 = vunpack.c.l.b16 %v647
          %v656 = vunpack.c.l.b16 %v648
          %v657 = vunpack.c.l.b16 %v649
          %v658 = vpack.c.b16 %v655, %v654
          %v659 = vpack.c.b16 %v657, %v656
          %v663 = vsel %vm595, %v645, 0
          %665 = vmatpush.bf16.msra.mxu0 0
          %666 = vmatpush.bf16.msra.mxu0 0
          %667 = vmatpush.bf16.msra.mxu0 0
          %668 = vmatpush.bf16.msra.mxu0 0
          %669 = vmatpush.bf16.msra.mxu0 0
          %670 = vmatpush.bf16.msra.mxu0 0
          %671 = vmatpush.bf16.msra.mxu0 %v659
          %672 = vmatpush.bf16.msra.mxu0 %v658
          %673 = vmatmul.bf16.gmra.mxu0 %v663
          %v674 = vpop.f32.mrf.mxu0
          %v675 = vadd.f32 0.0, %v674
          %v676 = vpop.f32.mrf.mxu0
          %v677 = vadd.f32 0.0, %v676
          %678 = vdwg.mxu0
          %679 = vst [vmem:[#allocation8] sm:$0xff] %v675
          %680 = vst [vmem:[#allocation8 + $0x8] sm:$0xff] %v677
        $region52: #{tpu_custom_call.1} parent=35 // pred_fallthru
          _
        // Predicated region
        $region53: #{tpu_custom_call.1} parent=35 // pred_check
          %p681 = pneg %p146
        $region54: #{tpu_custom_call.1} parent=35 // pred_check_branch
          %683 = sbr.rel (%p681) target = $region56
        $region55: #{tpu_custom_call.1} parent=35 // pred_region
          %s684 = smul.u32 2, %s24
          %686 = vsyncadd [#allocation5], 0
          %s687 = smul.addr %s684, 8
          %s688 = scalar_lea.hbm %s4, %s687
          %s689 = sshll.u32 [#allocation8], 4
          %s690 = int_to_ptr.vmem [resolvable:$true] %s689
          %s691 = sshll.u32 %s688, 4
          %s692 = int_to_ptr.hbm [resolvable:$true] %s691
          %697 = dma.vmem_to_hbm [thread:$0]  %s690, 256, %s692, [#allocation5], 128, 128, 8
        $region56: #{tpu_custom_call.1} parent=35 // pred_fallthru
          _
        // Predicated region
        $region57: #{tpu_custom_call.1} parent=35 // pred_check
          %p698 = pneg %p146
        $region58: #{tpu_custom_call.1} parent=35 // pred_check_branch
          %700 = sbr.rel (%p698) target = $region60
        $region59: #{tpu_custom_call.1} parent=35 // pred_region
          %702 = dma.done [#allocation5], 256
        $region60: #{tpu_custom_call.1} parent=35 // pred_fallthru
          _
      $region36: #{tpu_custom_call.1} parent=5 // pred_fallthru
        _
      %p703 = scmp.le.s32.totalorder 2, %s15
      // Predicated region
      $region61: #{tpu_custom_call.1} parent=5 // pred_check
        %p704 = pneg %p703
      $region62: #{tpu_custom_call.1} parent=5 // pred_check_branch
        %706 = sbr.rel (%p704) target = $region64
      $region63: #{tpu_custom_call.1} parent=5 // pred_region
        %s707 = ssub.s32 %s15, 2
      $region64: #{tpu_custom_call.1} parent=5 // pred_fallthru
        _
    $region6: #{tpu_custom_call.1} parent=1 // loop_footer
      %s19 = sadd.s32 1, %s15
    $region7: #{tpu_custom_call.1} parent=1 // loop_footer_branch
      %14 = sbr.rel target = $region3
    $region8: #{tpu_custom_call.1} parent=1 // loop_exit
      _
    %708 = vsyncpa [#allocation4], 1
    %s709 = scalar_lea.sflag [#allocation4], 1
    %710 = vsyncpa %s709, 1
    %711 = vsyncpa [#allocation5], 1
    %s712 = scalar_lea.sflag [#allocation5], 1
    %713 = vsyncpa %s712, 1
    %714 = vsyncpa [#allocation6], 1
    %s715 = scalar_lea.sflag [#allocation6], 1
    %716 = vsyncpa %s715, 1

</llo_original>
